<compile_context>
chip_gen: v7x
topology: tpu7x:2x2x1
jax: 0.10.0
libtpu: 0.0.40
codegen_flags: <defaults>
</compile_context>

<pallas_src>
import jax
import jax.numpy as jnp
from jax.experimental import pallas as pl
from jax.experimental.pallas import tpu as pltpu


def _make_kernel(seg_lens, dup_len):
    """seg_lens: per-input flat length (elements) per batch.
    dup_len:  number of leading elements of the concat to duplicate (v3)."""
    offs = []
    off = 0
    for seg in seg_lens:
        offs.append(off)
        off += seg
    total = off

    def kernel(x1_ref, x2_ref, x3_ref, x4_ref, o_ref):
        in_refs = (x1_ref, x2_ref, x3_ref, x4_ref)
        # 1) Primary concat: each input -> its contiguous output slice.
        for r, seg, dst in zip(in_refs, seg_lens, offs):
            o_ref[:, pl.ds(dst, seg)] = r[...]
        # 2) Duplicated slice v3 = v1[:, :w2]: copy straight from the sources
        #    (statically unrolled; supports w2 spanning multiple inputs).
        remaining = dup_len
        dst = total
        for r, seg in zip(in_refs, seg_lens):
            if remaining <= 0:
                break
            take = min(remaining, seg)
            o_ref[:, pl.ds(dst, take)] = r[:, pl.ds(0, take)]
            dst += take
            remaining -= take

    return kernel


def cat_slice_cat(x1, x2, x3, x4):
    xs = (x1, x2, x3, x4)
    n, _, h, w = x1.shape
    for x in xs:
        assert x.shape[0] == n and x.shape[2] == h and x.shape[3] == w, (
            "torch.cat(dim=1) requires matching N, H, W")
    hw = h * w
    cs = [int(x.shape[1]) for x in xs]
    c_total = sum(cs)

    w2 = int(x2.shape[3])
    w2_eff = min(w2, c_total)          # torch slice clamps to available channels
    c_out = c_total + w2_eff

    dtype = jnp.result_type(*(x.dtype for x in xs))   # torch.cat type-promotes
    seg_lens = tuple(c * hw for c in cs)
    l_out = c_out * hw

    # Flat per-batch layout: (N, 1, C_i*H*W).  Contiguous in NCHW, lane-dense.
    flats = [x.astype(dtype).reshape(n, 1, seg) for x, seg in zip(xs, seg_lens)]

    def spec(seg):
        return pl.BlockSpec((pl.Squeezed(), 1, seg), lambda b: (b, 0, 0))

    itemsize = jnp.dtype(dtype).itemsize
    block_bytes = (sum(seg_lens) + l_out) * itemsize
    # Double-buffered blocks + headroom, clamped to be safe on v5e/v6e/v7x.
    vmem_limit = int(min(64 * 1024 * 1024, max(16 * 1024 * 1024, 4 * block_bytes)))

    out = pl.pallas_call(
        _make_kernel(seg_lens, w2_eff * hw),
        out_shape=jax.ShapeDtypeStruct((n, 1, l_out), dtype),
        grid_spec=pltpu.PrefetchScalarGridSpec(
            num_scalar_prefetch=0,
            grid=(n,),
            in_specs=[spec(seg) for seg in seg_lens],
            out_specs=spec(l_out),
        ),
        compiler_params=pltpu.CompilerParams(
            dimension_semantics=("parallel",),
            vmem_limit_bytes=vmem_limit,
        ),
    )(*flats)

    return out.reshape(n, c_out, h, w)


def _reference(x1, x2, x3, x4):
    dtype = jnp.result_type(x1.dtype, x2.dtype, x3.dtype, x4.dtype)
    v1 = jnp.concatenate([x.astype(dtype) for x in (x1, x2, x3, x4)], axis=1)
    v3 = v1[:, 0:x2.shape[3]]
    return jnp.concatenate([v1, v3], axis=1)


if __name__ == "__main__":
    key = jax.random.PRNGKey(0)
    k = jax.random.split(key, 8)

    # Test 1: shapes mirroring the module (128 channels each); W matches across
    # inputs so torch.cat(dim=1) is well defined; batch=2 exercises the grid.
    x1 = jax.random.normal(k[0], (2, 128, 1, 3), dtype=jnp.float32)
    x2 = jax.random.normal(k[1], (2, 128, 1, 3), dtype=jnp.float32)
    x3 = jax.random.normal(k[2], (2, 128, 1, 3), dtype=jnp.float32)
    x4 = jax.random.normal(k[3], (2, 128, 1, 3), dtype=jnp.float32)
    out = jax.block_until_ready(cat_slice_cat(x1, x2, x3, x4))
    ref = _reference(x1, x2, x3, x4)
    assert out.shape == ref.shape, (out.shape, ref.shape)
    assert jnp.array_equal(out, ref), "test 1 mismatch vs reference"

    # Test 2: odd channel counts with w2 > c1 so the duplicated slice spans
    # x1 and x2 — exercises the clamp/spanning logic flagged in review.
    y1 = jax.random.normal(k[4], (1, 2, 1, 5), dtype=jnp.float32)
    y2 = jax.random.normal(k[5], (1, 3, 1, 5), dtype=jnp.float32)
    y3 = jax.random.normal(k[6], (1, 4, 1, 5), dtype=jnp.float32)
    y4 = jax.random.normal(k[7], (1, 1, 1, 5), dtype=jnp.float32)
    out2 = jax.block_until_ready(cat_slice_cat(y1, y2, y3, y4))
    ref2 = _reference(y1, y2, y3, y4)
    assert out2.shape == ref2.shape, (out2.shape, ref2.shape)
    assert jnp.array_equal(out2, ref2), "test 2 mismatch vs reference"

    print("KERNEL_OK")
</pallas_src>

<mosaic_0001>
module attributes {stable_mosaic.version = 11 : i64} {
  func.func @kernel(%arg0: i32, %arg1: memref<1x1x384xf32, #tpu.memory_space<vmem>>, %arg2: memref<1x1x384xf32, #tpu.memory_space<vmem>>, %arg3: memref<1x1x384xf32, #tpu.memory_space<vmem>>, %arg4: memref<1x1x384xf32, #tpu.memory_space<vmem>>, %arg5: memref<1x1x1545xf32, #tpu.memory_space<vmem>>) attributes {dimension_semantics = [#tpu.dimension_semantics<parallel>], iteration_bounds = array<i64: 2>, scalar_prefetch = 0 : i64, scratch_operands = 0 : i64, tpu.core_type = #tpu.core_type<tc>, window_params = [{transform_indices = @transform_0, window_bounds = array<i64: 1, 1, 384>}, {transform_indices = @transform_1, window_bounds = array<i64: 1, 1, 384>}, {transform_indices = @transform_2, window_bounds = array<i64: 1, 1, 384>}, {transform_indices = @transform_3, window_bounds = array<i64: 1, 1, 384>}, {transform_indices = @transform_4, window_bounds = array<i64: 1, 1, 1545>}]} {
    %c0 = arith.constant 0 : index
    %c0_0 = arith.constant 0 : index
    %c0_1 = arith.constant 0 : index
    %0 = vector.load %arg1[%c0, %c0_0, %c0_1] : memref<1x1x384xf32, #tpu.memory_space<vmem>>, vector<1x1x384xf32>
    %1 = vector.shape_cast %0 : vector<1x1x384xf32> to vector<1x384xf32>
    %c0_2 = arith.constant 0 : index
    %c0_3 = arith.constant 0 : index
    %c0_4 = arith.constant 0 : index
    %2 = vector.load %arg5[%c0_2, %c0_3, %c0_4] : memref<1x1x1545xf32, #tpu.memory_space<vmem>>, vector<1x1x384xf32>
    %3 = vector.shape_cast %2 : vector<1x1x384xf32> to vector<1x384xf32>
    %4 = vector.shape_cast %1 : vector<1x384xf32> to vector<1x1x384xf32>
    tpu.vector_store %arg5[%c0_2, %c0_3, %c0_4], %4 {strides = array<i32>} : memref<1x1x1545xf32, #tpu.memory_space<vmem>>, vector<1x1x384xf32>,
    %c0_5 = arith.constant 0 : index
    %c0_6 = arith.constant 0 : index
    %c0_7 = arith.constant 0 : index
    %5 = vector.load %arg2[%c0_5, %c0_6, %c0_7] : memref<1x1x384xf32, #tpu.memory_space<vmem>>, vector<1x1x384xf32>
    %6 = vector.shape_cast %5 : vector<1x1x384xf32> to vector<1x384xf32>
    %c0_8 = arith.constant 0 : index
    %c0_9 = arith.constant 0 : index
    %c384 = arith.constant 384 : index
    %7 = vector.load %arg5[%c0_8, %c0_9, %c384] : memref<1x1x1545xf32, #tpu.memory_space<vmem>>, vector<1x1x384xf32>
    %8 = vector.shape_cast %7 : vector<1x1x384xf32> to vector<1x384xf32>
    %9 = vector.shape_cast %6 : vector<1x384xf32> to vector<1x1x384xf32>
    tpu.vector_store %arg5[%c0_8, %c0_9, %c384], %9 {strides = array<i32>} : memref<1x1x1545xf32, #tpu.memory_space<vmem>>, vector<1x1x384xf32>,
    %c0_10 = arith.constant 0 : index
    %c0_11 = arith.constant 0 : index
    %c0_12 = arith.constant 0 : index
    %10 = vector.load %arg3[%c0_10, %c0_11, %c0_12] : memref<1x1x384xf32, #tpu.memory_space<vmem>>, vector<1x1x384xf32>
    %11 = vector.shape_cast %10 : vector<1x1x384xf32> to vector<1x384xf32>
    %c0_13 = arith.constant 0 : index
    %c0_14 = arith.constant 0 : index
    %c768 = arith.constant 768 : index
    %12 = vector.load %arg5[%c0_13, %c0_14, %c768] : memref<1x1x1545xf32, #tpu.memory_space<vmem>>, vector<1x1x384xf32>
    %13 = vector.shape_cast %12 : vector<1x1x384xf32> to vector<1x384xf32>
    %14 = vector.shape_cast %11 : vector<1x384xf32> to vector<1x1x384xf32>
    tpu.vector_store %arg5[%c0_13, %c0_14, %c768], %14 {strides = array<i32>} : memref<1x1x1545xf32, #tpu.memory_space<vmem>>, vector<1x1x384xf32>,
    %c0_15 = arith.constant 0 : index
    %c0_16 = arith.constant 0 : index
    %c0_17 = arith.constant 0 : index
    %15 = vector.load %arg4[%c0_15, %c0_16, %c0_17] : memref<1x1x384xf32, #tpu.memory_space<vmem>>, vector<1x1x384xf32>
    %16 = vector.shape_cast %15 : vector<1x1x384xf32> to vector<1x384xf32>
    %c0_18 = arith.constant 0 : index
    %c0_19 = arith.constant 0 : index
    %c1152 = arith.constant 1152 : index
    %17 = vector.load %arg5[%c0_18, %c0_19, %c1152] : memref<1x1x1545xf32, #tpu.memory_space<vmem>>, vector<1x1x384xf32>
    %18 = vector.shape_cast %17 : vector<1x1x384xf32> to vector<1x384xf32>
    %19 = vector.shape_cast %16 : vector<1x384xf32> to vector<1x1x384xf32>
    tpu.vector_store %arg5[%c0_18, %c0_19, %c1152], %19 {strides = array<i32>} : memref<1x1x1545xf32, #tpu.memory_space<vmem>>, vector<1x1x384xf32>,
    %c0_20 = arith.constant 0 : index
    %c0_21 = arith.constant 0 : index
    %c0_22 = arith.constant 0 : index
    %20 = vector.load %arg1[%c0_20, %c0_21, %c0_22] : memref<1x1x384xf32, #tpu.memory_space<vmem>>, vector<1x1x9xf32>
    %21 = vector.shape_cast %20 : vector<1x1x9xf32> to vector<1x9xf32>
    %c0_23 = arith.constant 0 : index
    %c0_24 = arith.constant 0 : index
    %c1536 = arith.constant 1536 : index
    %22 = vector.load %arg5[%c0_23, %c0_24, %c1536] : memref<1x1x1545xf32, #tpu.memory_space<vmem>>, vector<1x1x9xf32>
    %23 = vector.shape_cast %22 : vector<1x1x9xf32> to vector<1x9xf32>
    %24 = vector.shape_cast %21 : vector<1x9xf32> to vector<1x1x9xf32>
    tpu.vector_store %arg5[%c0_23, %c0_24, %c1536], %24 {strides = array<i32>} : memref<1x1x1545xf32, #tpu.memory_space<vmem>>, vector<1x1x9xf32>,
    return
  }
  func.func @transform_0(%arg0: i32) -> (i32, i32, i32) {
    %c0_i32 = arith.constant 0 : i32
    %c0_i32_0 = arith.constant 0 : i32
    %c0_i32_1 = arith.constant 0 : i32
    return %arg0, %c0_i32, %c0_i32_0 : i32, i32, i32
  }
  func.func @transform_1(%arg0: i32) -> (i32, i32, i32) {
    %c0_i32 = arith.constant 0 : i32
    %c0_i32_0 = arith.constant 0 : i32
    %c0_i32_1 = arith.constant 0 : i32
    return %arg0, %c0_i32, %c0_i32_0 : i32, i32, i32
  }
  func.func @transform_2(%arg0: i32) -> (i32, i32, i32) {
    %c0_i32 = arith.constant 0 : i32
    %c0_i32_0 = arith.constant 0 : i32
    %c0_i32_1 = arith.constant 0 : i32
    return %arg0, %c0_i32, %c0_i32_0 : i32, i32, i32
  }
  func.func @transform_3(%arg0: i32) -> (i32, i32, i32) {
    %c0_i32 = arith.constant 0 : i32
    %c0_i32_0 = arith.constant 0 : i32
    %c0_i32_1 = arith.constant 0 : i32
    return %arg0, %c0_i32, %c0_i32_0 : i32, i32, i32
  }
  func.func @transform_4(%arg0: i32) -> (i32, i32, i32) {
    %c0_i32 = arith.constant 0 : i32
    %c0_i32_0 = arith.constant 0 : i32
    %c0_i32_1 = arith.constant 0 : i32
    return %arg0, %c0_i32, %c0_i32_0 : i32, i32, i32
  }
}

</mosaic_0001>

<llo_original>
// kernel: tpu_custom_call.1
$region0: #{tpu_custom_call.1}
  #allocation0 [shape = 'u32[]', space=smem, size = 0x4, offset = 0x4, fixed_abs, tag = 'smem constant byte address 0x4 - core index']
  #allocation1 [shape = 'u32[144,128]{1,0:T(1,128)}', space=vmem, size = 0x12000, scoped, tag = 'internal scratch']
  %s0 = inlined_call_operand.hbm [shape: f32[2,1,384], index: 0, kind: input, shape index: {}]
  %s1 = inlined_call_operand.hbm [shape: f32[2,1,384], index: 1, kind: input, shape index: {}]
  %s2 = inlined_call_operand.vmem [shape: f32[2,1,384], index: 2, kind: input, shape index: {}]
  %s3 = inlined_call_operand.hbm [shape: f32[2,1,384], index: 3, kind: input, shape index: {}]
  %s4 = inlined_call_operand.hbm [shape: f32[2,1,1545], index: 4, kind: output, shape index: {}]
  %s5 = sld [smem:[#allocation0]]
  $region61: #{tpu_custom_call.1} parent=0
    _
  %s7 = ssub.s32 1, %s5
  %s8 = scalar_select 0, %s7, %s5
  $region1: #{tpu_custom_call.1} parent=0
    #allocation2 [shape = 'u8[3072]{0}', space=vmem, size = 0xc00, scoped, tag = 'input window, operand 0']
    #allocation3 [shape = 's32[2]{0}', space=sflag, size = 0x8, scoped, tag = 'scoped memory for tpu_custom_call.1']
    #allocation4 [shape = 's32[2]{0}', space=sflag, size = 0x8, scoped, tag = 'scoped memory for tpu_custom_call.1']
    #allocation5 [shape = 'u8[3072]{0}', space=vmem, size = 0xc00, scoped, tag = 'input window, operand 1']
    #allocation6 [shape = 's32[2]{0}', space=sflag, size = 0x8, scoped, tag = 'scoped memory for tpu_custom_call.1']
    #allocation7 [shape = 'u8[3072]{0}', space=vmem, size = 0xc00, scoped, tag = 'input window, operand 3']
    #allocation8 [shape = 'u8[13312]{0}', space=vmem, size = 0x3400, scoped, tag = 'output window, operand 0']
    %9 = vsyncpa [#allocation3], 0
    %s10 = scalar_lea.sflag [#allocation3], 1
    %11 = vsyncpa %s10, 0
    %12 = vsyncpa [#allocation6], 0
    %s13 = scalar_lea.sflag [#allocation6], 1
    %14 = vsyncpa %s13, 0
    %15 = vsyncpa [#allocation4], 0
    %s16 = scalar_lea.sflag [#allocation4], 1
    %17 = vsyncpa %s16, 0
    loop: start=0, step=1, limit=4
    $region2: #{tpu_custom_call.1} parent=1 // loop_pre_header
      _
    $region3: #{tpu_custom_call.1} parent=1 // loop_header
      %s19 = sphi 0, %s23
      %p20 = scmp.ge.s32.totalorder %s19, 4
      %s29 = sphi 0, %s31
      %s32 = sphi 0, %s29
      %s33 = sphi 0, %s32
      %s49 = sphi 0, %s33
      %s55 = sphi 0, %s57
      %s58 = sphi 0, %s55
      %s59 = sphi 0, %s58
      %s75 = sphi 0, %s59
      %s81 = sphi 0, %s83
      %s84 = sphi 0, %s81
      %s85 = sphi 0, %s84
      %s101 = sphi 0, %s85
      %s107 = sphi 0, %s109
      %s110 = sphi 0, %s107
      %s111 = sphi 0, %s110
      %s127 = sphi 0, %s111
      %s133 = sphi 0, %s135
      %s136 = sphi 0, %s133
      %s137 = sphi 0, %s136
      %s153 = sphi 0, %s137
    $region4: #{tpu_custom_call.1} parent=1 // loop_header_branch
      %22 = sbr.rel (%p20) target = $region8
    $region5: #{tpu_custom_call.1} parent=1 // loop_body
      %s24 = ssub.s32 %s19, 1
      %s25 = ssub.s32 %s19, 2
      %s26 = sadd.s32 %s19, 1
      %s27 = ssub.s32 %s19, %s26
      %p28 = scmp.eq.s32.totalorder %s27, 0
      %s30 = sadd.s32 %s29, 1
      %s31 = scalar_select %p28, %s29, %s30
      %p34 = pneg %p28
      %p35 = scmp.eq.s32.totalorder %s19, 1
      %p36 = por %p34, %p35
      %p37 = scmp.ne.s32.totalorder %s29, %s32
      %p38 = scmp.eq.s32.totalorder %s19, 0
      %p39 = por %p37, %p38
      %p40 = scmp.ne.s32.totalorder %s29, %s32
      %p41 = scmp.eq.s32.totalorder %s24, 1
      %p42 = por %p40, %p41
      %p43 = scmp.ne.s32.totalorder %s32, %s33
      %p44 = scmp.eq.s32.totalorder %s24, 0
      %p45 = por %p43, %p44
      %p46 = scmp.ne.s32.totalorder %s32, %s33
      %p47 = scmp.eq.s32.totalorder %s25, 1
      %p48 = por %p46, %p47
      %p50 = scmp.ne.s32.totalorder %s33, %s49
      %p51 = scmp.eq.s32.totalorder %s25, 0
      %p52 = por %p50, %p51
      %s53 = ssub.s32 %s19, %s26
      %p54 = scmp.eq.s32.totalorder %s53, 0
      %s56 = sadd.s32 %s55, 1
      %s57 = scalar_select %p54, %s55, %s56
      %p60 = pneg %p54
      %p61 = scmp.eq.s32.totalorder %s19, 1
      %p62 = por %p60, %p61
      %p63 = scmp.ne.s32.totalorder %s55, %s58
      %p64 = scmp.eq.s32.totalorder %s19, 0
      %p65 = por %p63, %p64
      %p66 = scmp.ne.s32.totalorder %s55, %s58
      %p67 = scmp.eq.s32.totalorder %s24, 1
      %p68 = por %p66, %p67
      %p69 = scmp.ne.s32.totalorder %s58, %s59
      %p70 = scmp.eq.s32.totalorder %s24, 0
      %p71 = por %p69, %p70
      %p72 = scmp.ne.s32.totalorder %s58, %s59
      %p73 = scmp.eq.s32.totalorder %s25, 1
      %p74 = por %p72, %p73
      %p76 = scmp.ne.s32.totalorder %s59, %s75
      %p77 = scmp.eq.s32.totalorder %s25, 0
      %p78 = por %p76, %p77
      %s79 = ssub.s32 %s19, %s26
      %p80 = scmp.eq.s32.totalorder %s79, 0
      %s82 = sadd.s32 %s81, 1
      %s83 = scalar_select %p80, %s81, %s82
      %p86 = pneg %p80
      %p87 = scmp.eq.s32.totalorder %s19, 1
      %p88 = por %p86, %p87
      %p89 = scmp.ne.s32.totalorder %s81, %s84
      %p90 = scmp.eq.s32.totalorder %s19, 0
      %p91 = por %p89, %p90
      %p92 = scmp.ne.s32.totalorder %s81, %s84
      %p93 = scmp.eq.s32.totalorder %s24, 1
      %p94 = por %p92, %p93
      %p95 = scmp.ne.s32.totalorder %s84, %s85
      %p96 = scmp.eq.s32.totalorder %s24, 0
      %p97 = por %p95, %p96
      %p98 = scmp.ne.s32.totalorder %s84, %s85
      %p99 = scmp.eq.s32.totalorder %s25, 1
      %p100 = por %p98, %p99
      %p102 = scmp.ne.s32.totalorder %s85, %s101
      %p103 = scmp.eq.s32.totalorder %s25, 0
      %p104 = por %p102, %p103
      %s105 = ssub.s32 %s19, %s26
      %p106 = scmp.eq.s32.totalorder %s105, 0
      %s108 = sadd.s32 %s107, 1
      %s109 = scalar_select %p106, %s107, %s108
      %p112 = pneg %p106
      %p113 = scmp.eq.s32.totalorder %s19, 1
      %p114 = por %p112, %p113
      %p115 = scmp.ne.s32.totalorder %s107, %s110
      %p116 = scmp.eq.s32.totalorder %s19, 0
      %p117 = por %p115, %p116
      %p118 = scmp.ne.s32.totalorder %s107, %s110
      %p119 = scmp.eq.s32.totalorder %s24, 1
      %p120 = por %p118, %p119
      %p121 = scmp.ne.s32.totalorder %s110, %s111
      %p122 = scmp.eq.s32.totalorder %s24, 0
      %p123 = por %p121, %p122
      %p124 = scmp.ne.s32.totalorder %s110, %s111
      %p125 = scmp.eq.s32.totalorder %s25, 1
      %p126 = por %p124, %p125
      %p128 = scmp.ne.s32.totalorder %s111, %s127
      %p129 = scmp.eq.s32.totalorder %s25, 0
      %p130 = por %p128, %p129
      %s131 = ssub.s32 %s19, %s26
      %p132 = scmp.eq.s32.totalorder %s131, 0
      %s134 = sadd.s32 %s133, 1
      %s135 = scalar_select %p132, %s133, %s134
      %p138 = pneg %p132
      %p139 = scmp.eq.s32.totalorder %s19, 1
      %p140 = por %p138, %p139
      %p141 = scmp.ne.s32.totalorder %s133, %s136
      %p142 = scmp.eq.s32.totalorder %s19, 0
      %p143 = por %p141, %p142
      %p144 = scmp.ne.s32.totalorder %s133, %s136
      %p145 = scmp.eq.s32.totalorder %s24, 1
      %p146 = por %p144, %p145
      %p147 = scmp.ne.s32.totalorder %s136, %s137
      %p148 = scmp.eq.s32.totalorder %s24, 0
      %p149 = por %p147, %p148
      %p150 = scmp.ne.s32.totalorder %s136, %s137
      %p151 = scmp.eq.s32.totalorder %s25, 1
      %p152 = por %p150, %p151
      %p154 = scmp.ne.s32.totalorder %s137, %s153
      %p155 = scmp.eq.s32.totalorder %s25, 0
      %p156 = por %p154, %p155
      %p157 = scmp.le.s32.totalorder 1, %s19
      %p158 = scmp.lt.s32.totalorder %s19, 3
      %p159 = pnand %p157, %p158
      %p160 = pneg %p159
      // Predicated region
      $region9: #{tpu_custom_call.1} parent=5 // pred_check
        _
      $region10: #{tpu_custom_call.1} parent=5 // pred_check_branch
        %162 = sbr.rel (%p159) target = $region12
      $region11: #{tpu_custom_call.1} parent=5 // pred_region
        %s163 = ssub.s32 %s19, 1
      $region12: #{tpu_custom_call.1} parent=5 // pred_fallthru
        _
      %p164 = scmp.lt.s32.totalorder %s19, 2
      // Predicated region
      $region13: #{tpu_custom_call.1} parent=5 // pred_check
        %p165 = pneg %p164
      $region14: #{tpu_custom_call.1} parent=5 // pred_check_branch
        %167 = sbr.rel (%p165) target = $region16
      $region15: #{tpu_custom_call.1} parent=5 // pred_region
        // Predicated region
        $region17: #{tpu_custom_call.1} parent=15 // pred_check
          %p168 = pneg %p39
        $region18: #{tpu_custom_call.1} parent=15 // pred_check_branch
          %170 = sbr.rel (%p168) target = $region20
        $region19: #{tpu_custom_call.1} parent=15 // pred_region
          %s171 = sand.u32 %s29, 1
          %s172 = scalar_lea.sflag [#allocation3], %s171
          %s173 = sand.u32 %s29, 1
          %s174 = smul.addr %s173, 3
          %s175 = scalar_lea.vmem [#allocation2], %s174
          %s177 = ssub.s32 48, 48
          %178 = vsyncadd %s172, %s177
          %s179 = smul.addr %s19, 3
          %s180 = smul.addr %s179, 16
          %s181 = scalar_lea.hbm %s0, %s180
          %s183 = sshll.u32 %s175, 4
          %s184 = int_to_ptr.vmem [resolvable:$true] %s183
          %186 = dma.hbm_to_vmem [thread:$0]  %s181, 48, %s184, %s172
        $region20: #{tpu_custom_call.1} parent=15 // pred_fallthru
          _
        // Predicated region
        $region21: #{tpu_custom_call.1} parent=15 // pred_check
          %p187 = pneg %p65
        $region22: #{tpu_custom_call.1} parent=15 // pred_check_branch
          %189 = sbr.rel (%p187) target = $region24
        $region23: #{tpu_custom_call.1} parent=15 // pred_region
          %s190 = sand.u32 %s19, 1
          %s191 = scalar_lea.sflag [#allocation6], %s190
          %s192 = sand.u32 %s55, 1
          %s193 = smul.addr %s192, 3
          %s194 = scalar_lea.vmem [#allocation5], %s193
          %s196 = ssub.s32 48, 48
          %197 = vsyncadd %s191, %s196
          %s198 = smul.addr %s19, 3
          %s199 = smul.addr %s198, 16
          %s200 = scalar_lea.hbm %s1, %s199
          %s202 = sshll.u32 %s194, 4
          %s203 = int_to_ptr.vmem [resolvable:$true] %s202
          %205 = dma.hbm_to_vmem [thread:$0]  %s200, 48, %s203, %s191
        $region24: #{tpu_custom_call.1} parent=15 // pred_fallthru
          _
        // Predicated region
        $region25: #{tpu_custom_call.1} parent=15 // pred_check
          %p206 = pneg %p91
        $region26: #{tpu_custom_call.1} parent=15 // pred_check_branch
          %208 = sbr.rel (%p206) target = $region28
        $region27: #{tpu_custom_call.1} parent=15 // pred_region
          %p209 = scmp.lt.s32.totalorder %s19, 1
          %s210 = scalar_select %p209, %s19, 1
          %s211 = smul.addr %s210, 3
          %s212 = scalar_lea.vmem %s2, %s211
        $region28: #{tpu_custom_call.1} parent=15 // pred_fallthru
          _
        // Predicated region
        $region29: #{tpu_custom_call.1} parent=15 // pred_check
          %p213 = pneg %p117
        $region30: #{tpu_custom_call.1} parent=15 // pred_check_branch
          %215 = sbr.rel (%p213) target = $region32
        $region31: #{tpu_custom_call.1} parent=15 // pred_region
          %s216 = sand.u32 %s19, 1
          %s217 = scalar_lea.sflag [#allocation6], %s216
          %s218 = sand.u32 %s107, 1
          %s219 = smul.addr %s218, 3
          %s220 = scalar_lea.vmem [#allocation7], %s219
          %s222 = ssub.s32 48, 48
          %223 = vsyncadd %s217, %s222
          %s224 = smul.addr %s19, 3
          %s225 = smul.addr %s224, 16
          %s226 = scalar_lea.hbm %s3, %s225
          %s228 = sshll.u32 %s220, 4
          %s229 = int_to_ptr.vmem [resolvable:$true] %s228
          %231 = dma.hbm_to_vmem [thread:$0]  %s226, 48, %s229, %s217
        $region32: #{tpu_custom_call.1} parent=15 // pred_fallthru
          _
      $region16: #{tpu_custom_call.1} parent=5 // pred_fallthru
        _
      %p232 = scmp.le.s32.totalorder 1, %s19
      %p233 = scmp.lt.s32.totalorder %s19, 3
      %p234 = pnand %p232, %p233
      %p235 = pneg %p234
      // Predicated region
      $region33: #{tpu_custom_call.1} parent=5 // pred_check
        _
      $region34: #{tpu_custom_call.1} parent=5 // pred_check_branch
        %237 = sbr.rel (%p234) target = $region36
      $region35: #{tpu_custom_call.1} parent=5 // pred_region
        %s238 = ssub.s32 %s19, 1
        %s239 = sand.u32 %s32, 1
        %s240 = scalar_lea.sflag [#allocation3], %s239
        %s241 = sand.u32 %s32, 1
        %s242 = smul.addr %s241, 3
        %s243 = scalar_lea.vmem [#allocation2], %s242
        // Predicated region
        $region37: #{tpu_custom_call.1} parent=35 // pred_check
          %p244 = pneg %p45
        $region38: #{tpu_custom_call.1} parent=35 // pred_check_branch
          %246 = sbr.rel (%p244) target = $region40
        $region39: #{tpu_custom_call.1} parent=35 // pred_region
          %247 = dma.done %s240, 48
        $region40: #{tpu_custom_call.1} parent=35 // pred_fallthru
          _
        %s248 = sand.u32 %s24, 1
        %s249 = scalar_lea.sflag [#allocation6], %s248
        %s250 = sand.u32 %s58, 1
        %s251 = smul.addr %s250, 3
        %s252 = scalar_lea.vmem [#allocation5], %s251
        // Predicated region
        $region41: #{tpu_custom_call.1} parent=35 // pred_check
          %p253 = pneg %p71
        $region42: #{tpu_custom_call.1} parent=35 // pred_check_branch
          %255 = sbr.rel (%p253) target = $region44
        $region43: #{tpu_custom_call.1} parent=35 // pred_region
          %256 = dma.done %s249, 48
        $region44: #{tpu_custom_call.1} parent=35 // pred_fallthru
          _
        %s257 = sand.u32 %s24, 1
        %s258 = scalar_lea.sflag [#allocation6], %s257
        %s259 = sand.u32 %s110, 1
        %s260 = smul.addr %s259, 3
        %s261 = scalar_lea.vmem [#allocation7], %s260
        // Predicated region
        $region45: #{tpu_custom_call.1} parent=35 // pred_check
          %p262 = pneg %p123
        $region46: #{tpu_custom_call.1} parent=35 // pred_check_branch
          %264 = sbr.rel (%p262) target = $region48
        $region47: #{tpu_custom_call.1} parent=35 // pred_region
          %265 = dma.done %s258, 48
        $region48: #{tpu_custom_call.1} parent=35 // pred_fallthru
          _
        %s266 = sand.u32 %s32, 1
        %s267 = scalar_lea.sflag [#allocation3], %s266
        %s268 = sand.u32 %s32, 1
        %s269 = smul.addr %s268, 3
        %s270 = scalar_lea.vmem [#allocation2], %s269
        %p271 = pneg %p45
        %p272 = pneg %p42
        %s273 = sand.u32 %s24, 1
        %s274 = scalar_lea.sflag [#allocation6], %s273
        %s275 = sand.u32 %s58, 1
        %s276 = smul.addr %s275, 3
        %s277 = scalar_lea.vmem [#allocation5], %s276
        %p278 = pneg %p71
        %p279 = pneg %p68
        %p280 = scmp.lt.s32.totalorder %s24, 1
        %s281 = scalar_select %p280, %s24, 1
        %s282 = smul.addr %s281, 3
        %s283 = scalar_lea.vmem %s2, %s282
        %p284 = pneg %p97
        %p285 = pneg %p94
        %s286 = sand.u32 %s24, 1
        %s287 = scalar_lea.sflag [#allocation6], %s286
        %s288 = sand.u32 %s110, 1
        %s289 = smul.addr %s288, 3
        %s290 = scalar_lea.vmem [#allocation7], %s289
        %p291 = pneg %p123
        %p292 = pneg %p120
        %p293 = pneg %p149
        %p294 = pneg %p146
        %s295 = sand.u32 %s136, 1
        %s296 = scalar_lea.sflag [#allocation4], %s295
        %s297 = sand.u32 %s136, 1
        %s298 = smul.addr %s297, 13
        %s299 = scalar_lea.vmem [#allocation8], %s298
        %p300 = scmp.lt.s32.totalorder %s24, 1
        %s301 = scalar_select %p300, %s24, 1
        %s302 = smul.addr %s301, 3
        %s303 = scalar_lea.vmem %s2, %s302
        %v304 = vld [vmem:[%s243] sm:$0x7]
        %v305 = vlaneseq
        %vm306 = vcmp.ge.s32.totalorder %v305, 0
        %vm307 = vcmp.lt.s32.totalorder %v305, 384
        %vm308 = vmand %vm306, %vm307
        %309 = vst.msk [vmem:[%s299] sm:$0x7] %vm308, %v304
        %v310 = vld [vmem:[%s252] sm:$0x7]
        %311 = vst.msk [vmem:[%s299 + $0x3] sm:$0x7] %vm308, %v310
        %v312 = vld [vmem:[%s303] sm:$0x7]
        %313 = vst.msk [vmem:[%s299 + $0x6] sm:$0x7] %vm308, %v312
        %v314 = vld [vmem:[%s261] sm:$0x7]
        %315 = vst.msk [vmem:[%s299 + $0x9] sm:$0x7] %vm308, %v314
        %v316 = vld [vmem:[%s243] sm:$0x1]
        %vm317 = vcmp.lt.s32.totalorder %v305, 9
        %vm318 = vmand %vm306, %vm317
        %319 = vst.msk [vmem:[%s299 + $0xc] sm:$0x1] %vm318, %v316
        %s320 = sand.u32 %s136, 1
        %s321 = scalar_lea.sflag [#allocation4], %s320
        %s322 = sand.u32 %s136, 1
        %s323 = smul.addr %s322, 13
        %s324 = scalar_lea.vmem [#allocation8], %s323
        // Predicated region
        $region49: #{tpu_custom_call.1} parent=35 // pred_check
          %p325 = pneg %p146
        $region50: #{tpu_custom_call.1} parent=35 // pred_check_branch
          %327 = sbr.rel (%p325) target = $region52
        $region51: #{tpu_custom_call.1} parent=35 // pred_region
          %s329 = ssub.s32 208, 208
          %330 = vsyncadd %s321, %s329
          %s331 = smul.addr %s24, 13
          %s332 = smul.addr %s331, 16
          %s333 = scalar_lea.hbm %s4, %s332
          %s335 = sshll.u32 %s324, 4
          %s336 = int_to_ptr.vmem [resolvable:$true] %s335
          %338 = dma.vmem_to_hbm [thread:$0]  %s336, 208, %s333, %s321
        $region52: #{tpu_custom_call.1} parent=35 // pred_fallthru
          _
      $region36: #{tpu_custom_call.1} parent=5 // pred_fallthru
        _
      %p339 = scmp.le.s32.totalorder 2, %s19
      // Predicated region
      $region53: #{tpu_custom_call.1} parent=5 // pred_check
        %p340 = pneg %p339
      $region54: #{tpu_custom_call.1} parent=5 // pred_check_branch
        %342 = sbr.rel (%p340) target = $region56
      $region55: #{tpu_custom_call.1} parent=5 // pred_region
        %s343 = ssub.s32 %s19, 2
        // Predicated region
        $region57: #{tpu_custom_call.1} parent=55 // pred_check
          %p344 = pneg %p152
        $region58: #{tpu_custom_call.1} parent=55 // pred_check_branch
          %346 = sbr.rel (%p344) target = $region60
        $region59: #{tpu_custom_call.1} parent=55 // pred_region
          %s347 = sand.u32 %s137, 1
          %s348 = scalar_lea.sflag [#allocation4], %s347
          %s349 = sand.u32 %s137, 1
          %s350 = smul.addr %s349, 13
          %s351 = scalar_lea.vmem [#allocation8], %s350
          %352 = dma.done %s348, 208
        $region60: #{tpu_custom_call.1} parent=55 // pred_fallthru
          _
      $region56: #{tpu_custom_call.1} parent=5 // pred_fallthru
        _
    $region6: #{tpu_custom_call.1} parent=1 // loop_footer
      %s23 = sadd.s32 1, %s19
    $region7: #{tpu_custom_call.1} parent=1 // loop_footer_branch
      %18 = sbr.rel target = $region3
    $region8: #{tpu_custom_call.1} parent=1 // loop_exit
      _
    %353 = vsyncpa [#allocation3], 1
    %s354 = scalar_lea.sflag [#allocation3], 1
    %355 = vsyncpa %s354, 1
    %356 = vsyncpa [#allocation6], 1
    %s357 = scalar_lea.sflag [#allocation6], 1
    %358 = vsyncpa %s357, 1
    %359 = vsyncpa [#allocation4], 1
    %s360 = scalar_lea.sflag [#allocation4], 1
    %361 = vsyncpa %s360, 1

</llo_original>
